<compile_context>
chip_gen: v6e
topology: v6e:2x2x1
jax: 0.10.0
libtpu: 0.0.40
codegen_flags: <defaults>
</compile_context>

<pallas_src>
import math

import jax
import jax.numpy as jnp
from jax.experimental import pallas as pl
from jax.experimental.pallas import tpu as pltpu

_EPS = 1e-12               # F.normalize default eps (clamp on the L2 norm)
_EPS_SQ = _EPS * _EPS      # equivalent clamp on the squared norm (f32-representable)

_MIN_TILE_BYTES = 4 * 1024 * 1024   # target input bytes per grid step (amortize step cost)
_TEMP_BYTES_PER_ELEM = 16           # allowance for in-kernel f32 temporaries per element


def _vmem_budgets():
    """Return (block_budget_bytes, vmem_limit_bytes), gated on the chip's VMEM size."""
    vmem = None
    try:
        info = pltpu.get_tpu_info()
        vmem = getattr(info, "vmem_capacity_bytes", None)
    except Exception:
        vmem = None
    if vmem is None:
        return 32 << 20, 48 << 20           # unknown: conservative (safe on v7x 64 MiB/TC)
    if vmem >= (100 << 20):
        return 80 << 20, 100 << 20          # v5e / v6e: 128 MiB VMEM
    return 40 << 20, 56 << 20               # v7x: 64 MiB VMEM per TensorCore


def _choose_tiles(B, C, L, in_bytes, out_bytes, block_budget):
    """Pick (Bb, tl) for a (Bb, C, tl) block: lane tile first, then batch block."""
    per_elem = 2 * in_bytes + 2 * out_bytes + _TEMP_BYTES_PER_ELEM  # dbl-buffered IO + temps
    max_elems = max(1, block_budget // per_elem)

    # Lane tile: largest multiple of 128 fitting the budget (at Bb=1), capped at L.
    if L <= 128:
        tl = L                                              # block dim == full array dim: legal
    else:
        tl_budget = max(128, (max_elems // max(C, 1)) // 128 * 128)
        tl = max(128, min((L // 128) * 128, tl_budget))

    # Batch block: grow per-step bytes toward the multi-MiB target within budget.
    target_elems = max(1, _MIN_TILE_BYTES // in_bytes)
    bb_target = max(1, target_elems // max(C * tl, 1))
    bb_budget = max(1, max_elems // max(C * tl, 1))
    Bb = max(1, min(B, bb_target, bb_budget))

    # v7x has 2 TensorCores: keep >= 2 parallel grid steps whenever possible.
    if pl.cdiv(B, Bb) * pl.cdiv(L, tl) < 2:
        if B >= 2:
            Bb = (B + 1) // 2                               # cdiv(B, Bb) == 2
        elif L >= 256:
            tl = max(128, ((L + 1) // 2) // 128 * 128)
    return Bb, tl


def _rmsnorm_kernel(x_ref, g_ref, o_ref):
    # x_ref: (Bb, C, TL) tile; g_ref: (1, C, 1) gain pre-scaled by sqrt(C).
    x = x_ref[...].astype(jnp.float32)
    sq = jnp.sum(x * x, axis=1, keepdims=True)              # (Bb, 1, TL) reduce over channels
    inv = jax.lax.rsqrt(jnp.maximum(sq, _EPS_SQ))           # EUP rsqrt; == 1/max(||x||_2, eps)
    o_ref[...] = (x * (inv * g_ref[...])).astype(o_ref.dtype)


def rmsnorm(x: jax.Array, g: jax.Array) -> jax.Array:
    """x: (B, C, L), g: (1, C, 1) -> (B, C, L)."""
    B, C, L = x.shape
    assert g.shape == (1, C, 1)

    # Fold sqrt(C) into the tiny C-element gain once, wrapper-side.
    g_scaled = (g.astype(jnp.float32) * math.sqrt(float(C))).reshape(1, C, 1)

    block_budget, vmem_limit = _vmem_budgets()
    Bb, tl = _choose_tiles(B, C, L, x.dtype.itemsize, x.dtype.itemsize, block_budget)

    return pl.pallas_call(
        _rmsnorm_kernel,
        out_shape=jax.ShapeDtypeStruct((B, C, L), x.dtype),
        grid_spec=pltpu.PrefetchScalarGridSpec(
            num_scalar_prefetch=0,
            grid=(pl.cdiv(B, Bb), pl.cdiv(L, tl)),
            in_specs=[
                pl.BlockSpec((Bb, C, tl), lambda bi, li: (bi, 0, li)),
                pl.BlockSpec((1, C, 1), lambda bi, li: (0, 0, 0)),   # gain stays resident
            ],
            out_specs=pl.BlockSpec((Bb, C, tl), lambda bi, li: (bi, 0, li)),
        ),
        compiler_params=pltpu.CompilerParams(
            dimension_semantics=("parallel", "parallel"),
            vmem_limit_bytes=vmem_limit,
        ),
    )(x, g_scaled)


def rmsnorm_ref(x, g):
    # Pure-JAX reference mirroring the PyTorch module exactly.
    norm = jnp.maximum(jnp.sqrt(jnp.sum(x * x, axis=1, keepdims=True)), _EPS)
    return (x / norm) * g * (x.shape[1] ** 0.5)


if __name__ == "__main__":
    key = jax.random.PRNGKey(0)

    # Small demo shape implied by the module's (B, C, L) forward.
    B, C, L = 2, 4, 16
    x = jax.random.normal(key, (B, C, L), dtype=jnp.float32)
    g = jnp.ones((1, C, 1), dtype=jnp.float32)   # nn.Parameter(torch.ones(1, dim, 1))

    out = jax.block_until_ready(rmsnorm(x, g))
    ref = rmsnorm_ref(x, g)
    assert out.shape == (B, C, L)
    assert jnp.allclose(out, ref, atol=1e-5, rtol=1e-5)

    # 128-aligned lane-tiled path.
    B2, C2, L2 = 2, 8, 256
    x2 = jax.random.normal(jax.random.PRNGKey(1), (B2, C2, L2), dtype=jnp.float32)
    g2 = jnp.full((1, C2, 1), 0.5, dtype=jnp.float32)
    out2 = jax.block_until_ready(rmsnorm(x2, g2))
    assert jnp.allclose(out2, rmsnorm_ref(x2, g2), atol=1e-5, rtol=1e-5)

    # Non-128-aligned L with B=1: exercises the masked ragged tail block (no transposes).
    B3, C3, L3 = 1, 8, 192
    x3 = jax.random.normal(jax.random.PRNGKey(2), (B3, C3, L3), dtype=jnp.float32)
    g3 = jnp.ones((1, C3, 1), dtype=jnp.float32)
    out3 = jax.block_until_ready(rmsnorm(x3, g3))
    assert jnp.allclose(out3, rmsnorm_ref(x3, g3), atol=1e-5, rtol=1e-5)

    print("KERNEL_OK")
</pallas_src>

<mosaic_0001>
module attributes {stable_mosaic.version = 11 : i64} {
  func.func @_rmsnorm_kernel(%arg0: i32, %arg1: i32, %arg2: memref<1x4x16xf32, #tpu.memory_space<vmem>>, %arg3: memref<1x4x1xf32, #tpu.memory_space<vmem>>, %arg4: memref<1x4x16xf32, #tpu.memory_space<vmem>>) attributes {dimension_semantics = [#tpu.dimension_semantics<parallel>, #tpu.dimension_semantics<parallel>], iteration_bounds = array<i64: 2, 1>, scalar_prefetch = 0 : i64, scratch_operands = 0 : i64, tpu.core_type = #tpu.core_type<tc>, window_params = [{transform_indices = @transform_0, window_bounds = array<i64: 1, 4, 16>}, {pipeline_mode = #tpu.pipeline_mode<synchronous>, transform_indices = @transform_1, window_bounds = array<i64: 1, 4, 1>}, {transform_indices = @transform_2, window_bounds = array<i64: 1, 4, 16>}]} {
    %c0 = arith.constant 0 : index
    %c0_0 = arith.constant 0 : index
    %c0_1 = arith.constant 0 : index
    %0 = vector.load %arg2[%c0, %c0_0, %c0_1] : memref<1x4x16xf32, #tpu.memory_space<vmem>>, vector<1x4x16xf32>
    %1 = arith.mulf %0, %0 : vector<1x4x16xf32>
    %cst = arith.constant dense<0.000000e+00> : vector<1x16xf32>
    %2 = vector.multi_reduction <add>, %1, %cst [1] : vector<1x4x16xf32> to vector<1x16xf32>
    %3 = vector.shape_cast %2 : vector<1x16xf32> to vector<1x1x16xf32>
    %cst_2 = arith.constant 1.000000e-24 : f32
    %4 = vector.broadcast %cst_2 : f32 to vector<1x1x16xf32>
    %5 = arith.maximumf %3, %4 : vector<1x1x16xf32>
    %6 = math.rsqrt %5 : vector<1x1x16xf32>
    %c0_3 = arith.constant 0 : index
    %c0_4 = arith.constant 0 : index
    %c0_5 = arith.constant 0 : index
    %7 = vector.load %arg3[%c0_3, %c0_4, %c0_5] : memref<1x4x1xf32, #tpu.memory_space<vmem>>, vector<1x4x1xf32>
    %8 = vector.broadcast %6 : vector<1x1x16xf32> to vector<1x4x16xf32>
    %9 = vector.broadcast %7 : vector<1x4x1xf32> to vector<1x4x16xf32>
    %10 = arith.mulf %8, %9 : vector<1x4x16xf32>
    %11 = arith.mulf %0, %10 : vector<1x4x16xf32>
    %c0_6 = arith.constant 0 : index
    %c0_7 = arith.constant 0 : index
    %c0_8 = arith.constant 0 : index
    %12 = vector.load %arg4[%c0_6, %c0_7, %c0_8] : memref<1x4x16xf32, #tpu.memory_space<vmem>>, vector<1x4x16xf32>
    tpu.vector_store %arg4[%c0_6, %c0_7, %c0_8], %11 {strides = array<i32>} : memref<1x4x16xf32, #tpu.memory_space<vmem>>, vector<1x4x16xf32>,
    return
  }
  func.func @transform_0(%arg0: i32, %arg1: i32) -> (i32, i32, i32) {
    %c0_i32 = arith.constant 0 : i32
    %c0_i32_0 = arith.constant 0 : i32
    return %arg0, %c0_i32, %arg1 : i32, i32, i32
  }
  func.func @transform_1(%arg0: i32, %arg1: i32) -> (i32, i32, i32) {
    %c0_i32 = arith.constant 0 : i32
    %c0_i32_0 = arith.constant 0 : i32
    %c0_i32_1 = arith.constant 0 : i32
    %c0_i32_2 = arith.constant 0 : i32
    return %c0_i32, %c0_i32_0, %c0_i32_1 : i32, i32, i32
  }
  func.func @transform_2(%arg0: i32, %arg1: i32) -> (i32, i32, i32) {
    %c0_i32 = arith.constant 0 : i32
    %c0_i32_0 = arith.constant 0 : i32
    return %arg0, %c0_i32, %arg1 : i32, i32, i32
  }
}

</mosaic_0001>

<llo_original>
// kernel: tpu_custom_call.1
$region0: #{tpu_custom_call.1}
  #allocation0 [shape = 'u32[]', space=smem, size = 0x4, offset = 0x4, fixed_abs, tag = 'smem constant byte address 0x4 - core index']
  #allocation1 [shape = 'u32[144,128]{1,0:T(1,128)}', space=vmem, size = 0x12000, scoped, tag = 'internal scratch']
  %s0 = inlined_call_operand.hbm [shape: f32[2,4,16], index: 0, kind: input, shape index: {}]
  %s1 = inlined_call_operand.vmem [shape: f32[1,4,1], index: 1, kind: input, shape index: {}]
  %s2 = inlined_call_operand.hbm [shape: f32[2,4,16], index: 2, kind: output, shape index: {}]
  %s3 = sld [smem:[#allocation0]]
  $region45: #{tpu_custom_call.1} parent=0
    _
  %s5 = ssub.s32 1, %s3
  %s6 = scalar_select 0, %s5, %s3
  $region1: #{tpu_custom_call.1} parent=0
    #allocation2 [shape = 'u8[4096]{0}', space=vmem, size = 0x1000, scoped, tag = 'input window, operand 0']
    #allocation3 [shape = 's32[2]{0}', space=sflag, size = 0x8, scoped, tag = 'scoped memory for tpu_custom_call.1']
    #allocation4 [shape = 's32[2]{0}', space=sflag, size = 0x8, scoped, tag = 'scoped memory for tpu_custom_call.1']
    #allocation5 [shape = 'u8[4096]{0}', space=vmem, size = 0x1000, scoped, tag = 'output window, operand 0']
    %7 = vsyncpa [#allocation3], 0
    %s8 = scalar_lea.sflag [#allocation3], 1
    %9 = vsyncpa %s8, 0
    %10 = vsyncpa [#allocation4], 0
    %s11 = scalar_lea.sflag [#allocation4], 1
    %12 = vsyncpa %s11, 0
    loop: start=0, step=1, limit=4
    $region2: #{tpu_custom_call.1} parent=1 // loop_pre_header
      _
    $region3: #{tpu_custom_call.1} parent=1 // loop_header
      %s14 = sphi 0, %s18
      %p15 = scmp.ge.s32.totalorder %s14, 4
      %s21 = sphi 0, %s33
      %s22 = sphi 0, %s29
      %s23 = sphi 0, %s21
      %s24 = sphi 0, %s22
      %s25 = sphi 0, %s23
      %s26 = sphi 0, %s24
      %s38 = sphi 0, %s40
      %s41 = sphi 0, %s38
      %s42 = sphi 0, %s41
      %s58 = sphi 0, %s42
      %s62 = sphi 0, %s62
      %s64 = sphi 0, %s62
      %s65 = sphi 0, %s64
      %s79 = sphi 0, %s65
      %s87 = sphi 0, %s89
      %s90 = sphi 0, %s87
      %s91 = sphi 0, %s90
      %s107 = sphi 0, %s91
    $region4: #{tpu_custom_call.1} parent=1 // loop_header_branch
      %17 = sbr.rel (%p15) target = $region8
    $region5: #{tpu_custom_call.1} parent=1 // loop_body
      %s19 = ssub.s32 %s14, 1
      %s20 = ssub.s32 %s14, 2
      %s27 = sadd.s32 1, %s22
      %p28 = scmp.ge.s32.totalorder %s27, 1
      %s29 = scalar_select %p28, 0, %s27
      %s30 = sadd.s32 1, %s21
      %s31 = scalar_select %p28, %s30, %s21
      %p32 = scmp.ge.s32.totalorder %s31, 2
      %s33 = scalar_select %p32, 0, %s31
      %s34 = ssub.s32 %s21, %s33
      %s35 = ssub.s32 %s22, %s29
      %s36 = sor.u32 %s34, %s35
      %p37 = scmp.eq.s32.totalorder %s36, 0
      %s39 = sadd.s32 %s38, 1
      %s40 = scalar_select %p37, %s38, %s39
      %p43 = pneg %p37
      %p44 = scmp.eq.s32.totalorder %s14, 1
      %p45 = por %p43, %p44
      %p46 = scmp.ne.s32.totalorder %s38, %s41
      %p47 = scmp.eq.s32.totalorder %s14, 0
      %p48 = por %p46, %p47
      %p49 = scmp.ne.s32.totalorder %s38, %s41
      %p50 = scmp.eq.s32.totalorder %s19, 1
      %p51 = por %p49, %p50
      %p52 = scmp.ne.s32.totalorder %s41, %s42
      %p53 = scmp.eq.s32.totalorder %s19, 0
      %p54 = por %p52, %p53
      %p55 = scmp.ne.s32.totalorder %s41, %s42
      %p56 = scmp.eq.s32.totalorder %s20, 1
      %p57 = por %p55, %p56
      %p59 = scmp.ne.s32.totalorder %s42, %s58
      %p60 = scmp.eq.s32.totalorder %s20, 0
      %p61 = por %p59, %p60
      %s63 = sadd.s32 %s62, 1
      %p66 = scmp.eq.s32.totalorder %s14, 1
      %p67 = scmp.ne.s32.totalorder %s62, %s64
      %p68 = scmp.eq.s32.totalorder %s14, 0
      %p69 = por %p67, %p68
      %p70 = scmp.ne.s32.totalorder %s62, %s64
      %p71 = scmp.eq.s32.totalorder %s19, 1
      %p72 = por %p70, %p71
      %p73 = scmp.ne.s32.totalorder %s64, %s65
      %p74 = scmp.eq.s32.totalorder %s19, 0
      %p75 = por %p73, %p74
      %p76 = scmp.ne.s32.totalorder %s64, %s65
      %p77 = scmp.eq.s32.totalorder %s20, 1
      %p78 = por %p76, %p77
      %p80 = scmp.ne.s32.totalorder %s65, %s79
      %p81 = scmp.eq.s32.totalorder %s20, 0
      %p82 = por %p80, %p81
      %s83 = ssub.s32 %s21, %s33
      %s84 = ssub.s32 %s22, %s29
      %s85 = sor.u32 %s83, %s84
      %p86 = scmp.eq.s32.totalorder %s85, 0
      %s88 = sadd.s32 %s87, 1
      %s89 = scalar_select %p86, %s87, %s88
      %p92 = pneg %p86
      %p93 = scmp.eq.s32.totalorder %s14, 1
      %p94 = por %p92, %p93
      %p95 = scmp.ne.s32.totalorder %s87, %s90
      %p96 = scmp.eq.s32.totalorder %s14, 0
      %p97 = por %p95, %p96
      %p98 = scmp.ne.s32.totalorder %s87, %s90
      %p99 = scmp.eq.s32.totalorder %s19, 1
      %p100 = por %p98, %p99
      %p101 = scmp.ne.s32.totalorder %s90, %s91
      %p102 = scmp.eq.s32.totalorder %s19, 0
      %p103 = por %p101, %p102
      %p104 = scmp.ne.s32.totalorder %s90, %s91
      %p105 = scmp.eq.s32.totalorder %s20, 1
      %p106 = por %p104, %p105
      %p108 = scmp.ne.s32.totalorder %s91, %s107
      %p109 = scmp.eq.s32.totalorder %s20, 0
      %p110 = por %p108, %p109
      %p111 = scmp.le.s32.totalorder 1, %s14
      %p112 = scmp.lt.s32.totalorder %s14, 3
      %p113 = pnand %p111, %p112
      %p114 = pneg %p113
      // Predicated region
      $region9: #{tpu_custom_call.1} parent=5 // pred_check
        _
      $region10: #{tpu_custom_call.1} parent=5 // pred_check_branch
        %116 = sbr.rel (%p113) target = $region12
      $region11: #{tpu_custom_call.1} parent=5 // pred_region
        %s117 = ssub.s32 %s14, 1
        // Predicated region
        $region13: #{tpu_custom_call.1} parent=11 // pred_check
          %p118 = pneg %p75
        $region14: #{tpu_custom_call.1} parent=11 // pred_check_branch
          %120 = sbr.rel (%p118) target = $region16
        $region15: #{tpu_custom_call.1} parent=11 // pred_region
          _
        $region16: #{tpu_custom_call.1} parent=11 // pred_fallthru
          _
      $region12: #{tpu_custom_call.1} parent=5 // pred_fallthru
        _
      %p121 = scmp.lt.s32.totalorder %s14, 2
      // Predicated region
      $region17: #{tpu_custom_call.1} parent=5 // pred_check
        %p122 = pneg %p121
      $region18: #{tpu_custom_call.1} parent=5 // pred_check_branch
        %124 = sbr.rel (%p122) target = $region20
      $region19: #{tpu_custom_call.1} parent=5 // pred_region
        // Predicated region
        $region21: #{tpu_custom_call.1} parent=19 // pred_check
          %p125 = pneg %p48
        $region22: #{tpu_custom_call.1} parent=19 // pred_check_branch
          %127 = sbr.rel (%p125) target = $region24
        $region23: #{tpu_custom_call.1} parent=19 // pred_region
          %s128 = sand.u32 %s38, 1
          %s129 = scalar_lea.sflag [#allocation3], %s128
          %s130 = sand.u32 %s38, 1
          %s131 = smul.addr %s130, 4
          %s132 = scalar_lea.vmem [#allocation2], %s131
          %s134 = ssub.s32 64, 64
          %135 = vsyncadd %s129, %s134
          %s136 = sadd.s32 %s22, %s21
          %s137 = smul.addr %s136, 64
          %s138 = scalar_lea.hbm %s0, %s137
          %s140 = sshll.u32 %s132, 4
          %s141 = int_to_ptr.vmem [resolvable:$true] %s140
          %143 = dma.hbm_to_vmem [thread:$0]  %s138, 64, %s141, %s129
        $region24: #{tpu_custom_call.1} parent=19 // pred_fallthru
          _
      $region20: #{tpu_custom_call.1} parent=5 // pred_fallthru
        _
      %p144 = scmp.le.s32.totalorder 1, %s14
      %p145 = scmp.lt.s32.totalorder %s14, 3
      %p146 = pnand %p144, %p145
      %p147 = pneg %p146
      // Predicated region
      $region25: #{tpu_custom_call.1} parent=5 // pred_check
        _
      $region26: #{tpu_custom_call.1} parent=5 // pred_check_branch
        %149 = sbr.rel (%p146) target = $region28
      $region27: #{tpu_custom_call.1} parent=5 // pred_region
        %s150 = ssub.s32 %s14, 1
        %s151 = sand.u32 %s41, 1
        %s152 = scalar_lea.sflag [#allocation3], %s151
        %s153 = sand.u32 %s41, 1
        %s154 = smul.addr %s153, 4
        %s155 = scalar_lea.vmem [#allocation2], %s154
        // Predicated region
        $region29: #{tpu_custom_call.1} parent=27 // pred_check
          %p156 = pneg %p54
        $region30: #{tpu_custom_call.1} parent=27 // pred_check_branch
          %158 = sbr.rel (%p156) target = $region32
        $region31: #{tpu_custom_call.1} parent=27 // pred_region
          %159 = dma.done %s152, 64
        $region32: #{tpu_custom_call.1} parent=27 // pred_fallthru
          _
        %s160 = sand.u32 %s41, 1
        %s161 = scalar_lea.sflag [#allocation3], %s160
        %s162 = sand.u32 %s41, 1
        %s163 = smul.addr %s162, 4
        %s164 = scalar_lea.vmem [#allocation2], %s163
        %p165 = pneg %p54
        %p166 = pneg %p51
        %p167 = pneg %p75
        %p168 = pneg %p72
        %p169 = pneg %p103
        %p170 = pneg %p100
        %s171 = sand.u32 %s90, 1
        %s172 = scalar_lea.sflag [#allocation4], %s171
        %s173 = sand.u32 %s90, 1
        %s174 = smul.addr %s173, 4
        %s175 = scalar_lea.vmem [#allocation5], %s174
        %v176 = vld [vmem:[%s155] sm:$0xf]
        %v177 = vmul.f32 %v176, %v176
        %vm178 = vcmask 125952
        %v179 = vsel %vm178, %v177, 0.0
        %v180 = vrot.slane %v179, 4
        %v181 = vadd.f32 %v179, %v180
        %v182 = vrot.slane %v181, 2
        %v183 = vadd.f32 %v181, %v182
        %v184 = vrot.slane %v183, 1
        %v185 = vadd.f32 %v183, %v184
        %v186 = vmax.f32 %v185, 1e-24
        %v187 = vrsqrt.pop %v186
        %v188 = vld [vmem:[%s1] sm:$0xf]
        %190 = vset.pattern.permute.xlu0 0
        %191 = vperm.xlu0 %190, %v188
        %v192 = vpop.permute.xlu0 %191
        %v194 = vmul.f32 %v187, %v192
        %v195 = vmul.f32 %v176, %v194
        %196 = vst.msk [vmem:[%s175] sm:$0xf] %vm178, %v195
        %s197 = sand.u32 %s90, 1
        %s198 = scalar_lea.sflag [#allocation4], %s197
        %s199 = sand.u32 %s90, 1
        %s200 = smul.addr %s199, 4
        %s201 = scalar_lea.vmem [#allocation5], %s200
        // Predicated region
        $region33: #{tpu_custom_call.1} parent=27 // pred_check
          %p202 = pneg %p100
        $region34: #{tpu_custom_call.1} parent=27 // pred_check_branch
          %204 = sbr.rel (%p202) target = $region36
        $region35: #{tpu_custom_call.1} parent=27 // pred_region
          %s206 = ssub.s32 64, 64
          %207 = vsyncadd %s198, %s206
          %s208 = sadd.s32 %s24, %s23
          %s209 = smul.addr %s208, 64
          %s210 = scalar_lea.hbm %s2, %s209
          %s212 = sshll.u32 %s201, 4
          %s213 = int_to_ptr.vmem [resolvable:$true] %s212
          %215 = dma.vmem_to_hbm [thread:$0]  %s213, 64, %s210, %s198
        $region36: #{tpu_custom_call.1} parent=27 // pred_fallthru
          _
      $region28: #{tpu_custom_call.1} parent=5 // pred_fallthru
        _
      %p216 = scmp.le.s32.totalorder 2, %s14
      // Predicated region
      $region37: #{tpu_custom_call.1} parent=5 // pred_check
        %p217 = pneg %p216
      $region38: #{tpu_custom_call.1} parent=5 // pred_check_branch
        %219 = sbr.rel (%p217) target = $region40
      $region39: #{tpu_custom_call.1} parent=5 // pred_region
        %s220 = ssub.s32 %s14, 2
        // Predicated region
        $region41: #{tpu_custom_call.1} parent=39 // pred_check
          %p221 = pneg %p106
        $region42: #{tpu_custom_call.1} parent=39 // pred_check_branch
          %223 = sbr.rel (%p221) target = $region44
        $region43: #{tpu_custom_call.1} parent=39 // pred_region
          %s224 = sand.u32 %s91, 1
          %s225 = scalar_lea.sflag [#allocation4], %s224
          %s226 = sand.u32 %s91, 1
          %s227 = smul.addr %s226, 4
          %s228 = scalar_lea.vmem [#allocation5], %s227
          %229 = dma.done %s225, 64
        $region44: #{tpu_custom_call.1} parent=39 // pred_fallthru
          _
      $region40: #{tpu_custom_call.1} parent=5 // pred_fallthru
        _
    $region6: #{tpu_custom_call.1} parent=1 // loop_footer
      %s18 = sadd.s32 1, %s14
    $region7: #{tpu_custom_call.1} parent=1 // loop_footer_branch
      %13 = sbr.rel target = $region3
    $region8: #{tpu_custom_call.1} parent=1 // loop_exit
      _
    %230 = vsyncpa [#allocation3], 1
    %s231 = scalar_lea.sflag [#allocation3], 1
    %232 = vsyncpa %s231, 1
    %233 = vsyncpa [#allocation4], 1
    %s234 = scalar_lea.sflag [#allocation4], 1
    %235 = vsyncpa %s234, 1

</llo_original>
